<compile_context>
chip_gen: v5e
topology: v5e:2x2
jax: 0.10.0
libtpu: 0.0.40
codegen_flags: <defaults>
</compile_context>

<pallas_src>
import functools

import jax
import jax.numpy as jnp
from jax.experimental import pallas as pl
from jax.experimental.pallas import tpu as pltpu


def _round_up(x, m):
    return ((x + m - 1) // m) * m


def _const_index_map(ndim):
    zeros = (0,) * ndim
    return lambda i: zeros


def _twinned_q_kernel(x_ref, w1_ref, w2_ref, w3_ref, b_ref, out_ref, *,
                      split_l23, hp, ap):
    """One batch tile of the fused twin MLP.

    Weights arrive already in their compute dtype (f32 or bf16) -- no per-tile
    weight casts.  Bias-add / ReLU / accumulation stay in f32.
    """
    cdt = w1_ref.dtype                    # compute dtype follows the weights
    h2p = w1_ref.shape[1]                 # fused (padded) hidden width

    x = x_ref[...].astype(cdt)

    # Layer 1 (always twin-fused: shared input x): (TB, n_in) @ (n_in, H2P).
    h = jnp.dot(x, w1_ref[...], preferred_element_type=jnp.float32)
    h = jnp.maximum(h + b_ref[0:1, :h2p], 0.0)

    if not split_l23:
        # hidden_dim < 128: block-diagonal fused layers 2/3 (fills the MXU).
        outw = w3_ref.shape[1]
        h = jnp.dot(h.astype(cdt), w2_ref[...],
                    preferred_element_type=jnp.float32)
        h = jnp.maximum(h + b_ref[1:2, :h2p], 0.0)
        out = jnp.dot(h.astype(cdt), w3_ref[...],
                      preferred_element_type=jnp.float32) + b_ref[2:3, :outw]
        out_ref[...] = out.astype(out_ref.dtype)
    else:
        # hidden_dim >= 128: per-twin layers 2/3 (half the MXU work / weight
        # bytes of block-diag), writing the two halves of one lane-dense slab.
        h = h.astype(cdt)
        ha, hb = h[:, :hp], h[:, hp:]
        ha = jnp.maximum(
            jnp.dot(ha, w2_ref[0], preferred_element_type=jnp.float32)
            + b_ref[1:2, :hp], 0.0)
        hb = jnp.maximum(
            jnp.dot(hb, w2_ref[1], preferred_element_type=jnp.float32)
            + b_ref[1:2, hp:2 * hp], 0.0)
        oa = jnp.dot(ha.astype(cdt), w3_ref[0],
                     preferred_element_type=jnp.float32) + b_ref[2:3, :ap]
        ob = jnp.dot(hb.astype(cdt), w3_ref[1],
                     preferred_element_type=jnp.float32) + b_ref[2:3, ap:2 * ap]
        out_ref[:, :ap] = oa.astype(out_ref.dtype)
        out_ref[:, ap:] = ob.astype(out_ref.dtype)


def fuse_twinned_q_params(params, *, weight_dtype=jnp.float32):
    """Fuse/pad the 12 per-twin tensors once, outside the per-step forward.

    hidden_dim < 128  (fused mode):
      W1f (n_in, H2P), W2f (H2P, H2P) block-diag, W3f (H2P, OUTP),
      biases (3, max(H2P, OUTP))      H2P = round_up(2H,128), OUTP = round_up(2A,128)
    hidden_dim >= 128 (split mode):
      W1f (n_in, 2*Hp), W2s (2, Hp, Hp), W3s (2, Hp, Ap),
      biases (3, max(2*Hp, 2*Ap))     Hp = round_up(H,128), Ap = round_up(A,128)

    Weights are zero-padded FIRST, then cast to `weight_dtype` (zeros are exact
    in bf16, keeping the padded output columns exactly 0).  Biases stay f32.
    """
    (w1a, b1a, w2a, b2a, w3a, b3a,
     w1b, b1b, w2b, b2b, w3b, b3b) = params
    n_in, H = w1a.shape
    A = w3a.shape[1]
    f32 = jnp.float32
    split_l23 = H >= 128

    if not split_l23:
        H2, A2 = 2 * H, 2 * A
        H2P = _round_up(H2, 128)
        OUTP = _round_up(A2, 128)
        w1f = jnp.zeros((n_in, H2P), f32).at[:, :H].set(w1a).at[:, H:H2].set(w1b)
        w2f = (jnp.zeros((H2P, H2P), f32)
               .at[:H, :H].set(w2a).at[H:H2, H:H2].set(w2b))
        w3f = (jnp.zeros((H2P, OUTP), f32)
               .at[:H, :A].set(w3a).at[H:H2, A:A2].set(w3b))
        padw = max(H2P, OUTP)
        biases = jnp.zeros((3, padw), f32)
        biases = (biases
                  .at[0, :H].set(b1a.reshape(-1)).at[0, H:H2].set(b1b.reshape(-1))
                  .at[1, :H].set(b2a.reshape(-1)).at[1, H:H2].set(b2b.reshape(-1))
                  .at[2, :A].set(b3a.reshape(-1)).at[2, A:A2].set(b3b.reshape(-1)))
    else:
        Hp = _round_up(H, 128)
        Ap = _round_up(A, 128)
        H2P = 2 * Hp
        w1f = (jnp.zeros((n_in, H2P), f32)
               .at[:, :H].set(w1a).at[:, Hp:Hp + H].set(w1b))
        w2f = (jnp.zeros((2, Hp, Hp), f32)
               .at[0, :H, :H].set(w2a).at[1, :H, :H].set(w2b))
        w3f = (jnp.zeros((2, Hp, Ap), f32)
               .at[0, :H, :A].set(w3a).at[1, :H, :A].set(w3b))
        padw = max(H2P, 2 * Ap)
        biases = jnp.zeros((3, padw), f32)
        biases = (biases
                  .at[0, :H].set(b1a.reshape(-1)).at[0, Hp:Hp + H].set(b1b.reshape(-1))
                  .at[1, :H].set(b2a.reshape(-1)).at[1, Hp:Hp + H].set(b2b.reshape(-1))
                  .at[2, :A].set(b3a.reshape(-1)).at[2, Ap:Ap + A].set(b3b.reshape(-1)))

    return (w1f.astype(weight_dtype), w2f.astype(weight_dtype),
            w3f.astype(weight_dtype), biases)


def _pick_batch_tile(B, block_batch):
    """Pick (TB, padded_B).

    Prefers (a) a TB that divides B (no jnp.pad full copy of `states`),
    (b) >= 2 grid steps so ("parallel",) spans both v7x TensorCores, and
    (c) large tiles to amortize the ~0.35us per-grid-step overhead.
    """
    if B < 16:
        return B, B                            # single full-extent tile
    if B % 8 == 0:
        target = min(block_batch, _round_up((B + 1) // 2, 8))
        target = max(8, (target // 8) * 8)
        tb = next(t for t in range(target, 7, -8) if B % t == 0)
        return tb, B
    if B <= block_batch:
        return B, B                            # ragged batch, single full tile
    tb = max(8, (block_batch // 8) * 8)        # fall back to padding
    return tb, _round_up(B, tb)


@functools.partial(jax.jit, static_argnames=("num_actions", "block_batch"))
def twinned_q_forward(states, fused_params, *, num_actions, block_batch=512):
    """Forward pass. Returns (q1, q2), each (batch, num_actions).

    Output dtype follows the fused-weight dtype (bf16 weights -> bf16 output
    slab, halving the padding-dominated writeback); cast in the caller if f32
    is required.
    """
    w1f, w2f, w3f, biases = fused_params
    B, n_in = states.shape
    split_l23 = (w2f.ndim == 3)
    if split_l23:
        hp = w2f.shape[-1]
        ap = w3f.shape[-1]
        outw = 2 * ap
    else:
        hp = ap = 0
        outw = w3f.shape[1]
    out_dtype = w1f.dtype

    TB, Bp = _pick_batch_tile(B, block_batch)
    if Bp != B:
        # TODO(synk): a masked last-tile store would avoid this full-copy pad
        # (only hit for ragged batches larger than block_batch).
        states = jnp.pad(states, ((0, Bp - B), (0, 0)))
    grid = (Bp // TB,)

    # VMEM budget: resident weights (counted twice to cover double buffering)
    # + double-buffered batch in/out tiles + slack.  Never below the default.
    wsz = w1f.dtype.itemsize
    weight_bytes = (w1f.size + w2f.size + w3f.size) * wsz + biases.size * 4
    tile_bytes = (TB * n_in * states.dtype.itemsize
                  + TB * outw * jnp.dtype(out_dtype).itemsize)
    vmem_limit = int(min(128 << 20,
                         max(32 << 20, 2 * (weight_bytes + tile_bytes) + (4 << 20))))

    if split_l23:
        flops = 2 * Bp * (n_in * w1f.shape[1] + 2 * hp * hp + 2 * hp * ap)
    else:
        flops = 2 * Bp * (n_in * w1f.shape[1]
                          + w1f.shape[1] * w2f.shape[1] + w2f.shape[1] * outw)
    bytes_accessed = int(Bp * n_in * states.dtype.itemsize + weight_bytes
                         + Bp * outw * jnp.dtype(out_dtype).itemsize)

    out = pl.pallas_call(
        functools.partial(_twinned_q_kernel, split_l23=split_l23, hp=hp, ap=ap),
        out_shape=jax.ShapeDtypeStruct((Bp, outw), out_dtype),
        grid=grid,
        in_specs=[
            pl.BlockSpec((TB, n_in), lambda i: (i, 0)),        # batch tile
            pl.BlockSpec(w1f.shape, _const_index_map(w1f.ndim)),   # resident weights
            pl.BlockSpec(w2f.shape, _const_index_map(w2f.ndim)),
            pl.BlockSpec(w3f.shape, _const_index_map(w3f.ndim)),
            pl.BlockSpec(biases.shape, _const_index_map(2)),   # packed f32 biases
        ],
        out_specs=pl.BlockSpec((TB, outw), lambda i: (i, 0)),
        compiler_params=pltpu.CompilerParams(
            dimension_semantics=("parallel",),
            vmem_limit_bytes=vmem_limit),
        cost_estimate=pl.CostEstimate(
            flops=flops, transcendentals=0, bytes_accessed=bytes_accessed),
    )(states, w1f, w2f, w3f, biases)

    out = out[:B]
    q1 = out[:, :num_actions]
    if split_l23:
        q2 = out[:, ap:ap + num_actions]
    else:
        q2 = out[:, num_actions:2 * num_actions]
    return q1, q2


def _xavier_uniform(key, fan_in, fan_out, gain=1.0):
    # Matches torch.nn.init.xavier_uniform_ (gain=1); stored (in, out) so the
    # kernel computes y = x @ W + b == torch's x @ W_t.T + b.
    bound = gain * jnp.sqrt(6.0 / (fan_in + fan_out))
    return jax.random.uniform(
        key, (fan_in, fan_out), dtype=jnp.float32, minval=-bound, maxval=bound)


def init_twinned_q_params(key, num_inputs, num_actions, hidden_dim):
    keys = jax.random.split(key, 6)

    def qnet_params(k1, k2, k3):
        w1 = _xavier_uniform(k1, num_inputs, hidden_dim)
        b1 = jnp.zeros((1, hidden_dim), jnp.float32)
        w2 = _xavier_uniform(k2, hidden_dim, hidden_dim)
        b2 = jnp.zeros((1, hidden_dim), jnp.float32)
        w3 = _xavier_uniform(k3, hidden_dim, num_actions)
        b3 = jnp.zeros((1, num_actions), jnp.float32)
        return (w1, b1, w2, b2, w3, b3)

    q1_params = qnet_params(keys[0], keys[1], keys[2])
    q2_params = qnet_params(keys[3], keys[4], keys[5])
    return q1_params + q2_params


def _reference_forward(states, params):
    (w1a, b1a, w2a, b2a, w3a, b3a,
     w1b, b1b, w2b, b2b, w3b, b3b) = params

    def mlp(x, w1, b1, w2, b2, w3, b3):
        h1 = jax.nn.relu(x @ w1 + b1)
        h2 = jax.nn.relu(h1 @ w2 + b2)
        return h2 @ w3 + b3

    return (mlp(states, w1a, b1a, w2a, b2a, w3a, b3a),
            mlp(states, w1b, b1b, w2b, b2b, w3b, b3b))


if __name__ == "__main__":
    key = jax.random.PRNGKey(0)

    cases = [
        # fused block-diag mode (hidden < 128), f32: exact torch parity
        dict(batch=64, num_inputs=16, num_actions=4, hidden_dim=32,
             weight_dtype=jnp.float32, atol=1e-5, rtol=1e-5),
        # fused mode, bf16 weights / MXU inputs, f32 accumulation: loose parity
        dict(batch=64, num_inputs=16, num_actions=4, hidden_dim=32,
             weight_dtype=jnp.bfloat16, atol=5e-2, rtol=5e-2),
        # split mode (hidden >= 128): per-twin layers 2/3, f32
        dict(batch=32, num_inputs=16, num_actions=4, hidden_dim=128,
             weight_dtype=jnp.float32, atol=1e-4, rtol=1e-4),
    ]

    for idx, c in enumerate(cases):
        k_params, k_state = jax.random.split(jax.random.fold_in(key, idx))
        params = init_twinned_q_params(
            k_params, c["num_inputs"], c["num_actions"], c["hidden_dim"])
        states = jax.random.normal(
            k_state, (c["batch"], c["num_inputs"]), dtype=jnp.float32)

        fused = fuse_twinned_q_params(params, weight_dtype=c["weight_dtype"])
        q1, q2 = twinned_q_forward(states, fused, num_actions=c["num_actions"])
        q1, q2 = jax.block_until_ready((q1, q2))

        r1, r2 = _reference_forward(states, params)
        assert q1.shape == (c["batch"], c["num_actions"])
        assert q2.shape == (c["batch"], c["num_actions"])
        assert jnp.allclose(q1.astype(jnp.float32), r1,
                            atol=c["atol"], rtol=c["rtol"])
        assert jnp.allclose(q2.astype(jnp.float32), r2,
                            atol=c["atol"], rtol=c["rtol"])

    print("KERNEL_OK")
</pallas_src>

<mosaic_0001>
module attributes {stable_mosaic.version = 11 : i64} {
  func.func @_twinned_q_kernel(%arg0: i32, %arg1: memref<32x16xf32, #tpu.memory_space<vmem>>, %arg2: memref<16x128xf32, #tpu.memory_space<vmem>>, %arg3: memref<128x128xf32, #tpu.memory_space<vmem>>, %arg4: memref<128x128xf32, #tpu.memory_space<vmem>>, %arg5: memref<3x128xf32, #tpu.memory_space<vmem>>, %arg6: memref<32x128xf32, #tpu.memory_space<vmem>>) attributes {dimension_semantics = [#tpu.dimension_semantics<parallel>], iteration_bounds = array<i64: 2>, scalar_prefetch = 0 : i64, scratch_operands = 0 : i64, tpu.core_type = #tpu.core_type<tc>, window_params = [{transform_indices = @transform_0, window_bounds = array<i64: 32, 16>}, {pipeline_mode = #tpu.pipeline_mode<synchronous>, transform_indices = @transform_1, window_bounds = array<i64: 16, 128>}, {pipeline_mode = #tpu.pipeline_mode<synchronous>, transform_indices = @transform_2, window_bounds = array<i64: 128, 128>}, {pipeline_mode = #tpu.pipeline_mode<synchronous>, transform_indices = @transform_3, window_bounds = array<i64: 128, 128>}, {pipeline_mode = #tpu.pipeline_mode<synchronous>, transform_indices = @transform_4, window_bounds = array<i64: 3, 128>}, {transform_indices = @transform_5, window_bounds = array<i64: 32, 128>}]} {
    %c0 = arith.constant 0 : index
    %c0_0 = arith.constant 0 : index
    %0 = vector.load %arg1[%c0, %c0_0] : memref<32x16xf32, #tpu.memory_space<vmem>>, vector<32x16xf32>
    %c0_1 = arith.constant 0 : index
    %c0_2 = arith.constant 0 : index
    %1 = vector.load %arg2[%c0_1, %c0_2] : memref<16x128xf32, #tpu.memory_space<vmem>>, vector<16x128xf32>
    %cst = arith.constant dense<0.000000e+00> : vector<32x128xf32>
    %2 = tpu.matmul %0, %1, %cst {dimension_numbers = #tpu.dot_dimension_numbers<[1], [0], [0], [1], [0, 0, 1, 1], [], []>} : vector<32x16xf32>, vector<16x128xf32>, vector<32x128xf32> -> vector<32x128xf32>
    %c0_3 = arith.constant 0 : index
    %c0_4 = arith.constant 0 : index
    %3 = vector.load %arg5[%c0_3, %c0_4] : memref<3x128xf32, #tpu.memory_space<vmem>>, vector<1x128xf32>
    %4 = vector.broadcast %3 : vector<1x128xf32> to vector<32x128xf32>
    %5 = arith.addf %2, %4 : vector<32x128xf32>
    %cst_5 = arith.constant 0.000000e+00 : f32
    %6 = vector.broadcast %cst_5 : f32 to vector<32x128xf32>
    %7 = arith.maximumf %5, %6 : vector<32x128xf32>
    %c0_6 = arith.constant 0 : index
    %c0_7 = arith.constant 0 : index
    %8 = vector.load %arg3[%c0_6, %c0_7] : memref<128x128xf32, #tpu.memory_space<vmem>>, vector<128x128xf32>
    %cst_8 = arith.constant dense<0.000000e+00> : vector<32x128xf32>
    %9 = tpu.matmul %7, %8, %cst_8 {dimension_numbers = #tpu.dot_dimension_numbers<[1], [0], [0], [1], [0, 0, 1, 1], [], []>} : vector<32x128xf32>, vector<128x128xf32>, vector<32x128xf32> -> vector<32x128xf32>
    %c1 = arith.constant 1 : index
    %c0_9 = arith.constant 0 : index
    %10 = vector.load %arg5[%c1, %c0_9] : memref<3x128xf32, #tpu.memory_space<vmem>>, vector<1x128xf32>
    %11 = vector.broadcast %10 : vector<1x128xf32> to vector<32x128xf32>
    %12 = arith.addf %9, %11 : vector<32x128xf32>
    %cst_10 = arith.constant 0.000000e+00 : f32
    %13 = vector.broadcast %cst_10 : f32 to vector<32x128xf32>
    %14 = arith.maximumf %12, %13 : vector<32x128xf32>
    %c0_11 = arith.constant 0 : index
    %c0_12 = arith.constant 0 : index
    %15 = vector.load %arg4[%c0_11, %c0_12] : memref<128x128xf32, #tpu.memory_space<vmem>>, vector<128x128xf32>
    %cst_13 = arith.constant dense<0.000000e+00> : vector<32x128xf32>
    %16 = tpu.matmul %14, %15, %cst_13 {dimension_numbers = #tpu.dot_dimension_numbers<[1], [0], [0], [1], [0, 0, 1, 1], [], []>} : vector<32x128xf32>, vector<128x128xf32>, vector<32x128xf32> -> vector<32x128xf32>
    %c2 = arith.constant 2 : index
    %c0_14 = arith.constant 0 : index
    %17 = vector.load %arg5[%c2, %c0_14] : memref<3x128xf32, #tpu.memory_space<vmem>>, vector<1x128xf32>
    %18 = vector.broadcast %17 : vector<1x128xf32> to vector<32x128xf32>
    %19 = arith.addf %16, %18 : vector<32x128xf32>
    %c0_15 = arith.constant 0 : index
    %c0_16 = arith.constant 0 : index
    %20 = vector.load %arg6[%c0_15, %c0_16] : memref<32x128xf32, #tpu.memory_space<vmem>>, vector<32x128xf32>
    tpu.vector_store %arg6[%c0_15, %c0_16], %19 {strides = array<i32>} : memref<32x128xf32, #tpu.memory_space<vmem>>, vector<32x128xf32>,
    return
  }
  func.func @transform_0(%arg0: i32) -> (i32, i32) {
    %c0_i32 = arith.constant 0 : i32
    %c0_i32_0 = arith.constant 0 : i32
    return %arg0, %c0_i32 : i32, i32
  }
  func.func @transform_1(%arg0: i32) -> (i32, i32) {
    %c0_i32 = arith.constant 0 : i32
    %c0_i32_0 = arith.constant 0 : i32
    %c0_i32_1 = arith.constant 0 : i32
    return %c0_i32, %c0_i32_0 : i32, i32
  }
  func.func @transform_2(%arg0: i32) -> (i32, i32) {
    %c0_i32 = arith.constant 0 : i32
    %c0_i32_0 = arith.constant 0 : i32
    %c0_i32_1 = arith.constant 0 : i32
    return %c0_i32, %c0_i32_0 : i32, i32
  }
  func.func @transform_3(%arg0: i32) -> (i32, i32) {
    %c0_i32 = arith.constant 0 : i32
    %c0_i32_0 = arith.constant 0 : i32
    %c0_i32_1 = arith.constant 0 : i32
    return %c0_i32, %c0_i32_0 : i32, i32
  }
  func.func @transform_4(%arg0: i32) -> (i32, i32) {
    %c0_i32 = arith.constant 0 : i32
    %c0_i32_0 = arith.constant 0 : i32
    %c0_i32_1 = arith.constant 0 : i32
    return %c0_i32, %c0_i32_0 : i32, i32
  }
  func.func @transform_5(%arg0: i32) -> (i32, i32) {
    %c0_i32 = arith.constant 0 : i32
    %c0_i32_0 = arith.constant 0 : i32
    return %arg0, %c0_i32 : i32, i32
  }
}

</mosaic_0001>

<llo_original>
// kernel: twinned_q_forward.1
$region0: #{twinned_q_forward.1}
  #allocation0 [shape = 'u32[]', space=smem, size = 0x4, offset = 0x4, fixed_abs, tag = 'smem constant byte address 0x4 - core index']
  #allocation1 [shape = 'u32[72,128]{1,0:T(1,128)}', space=vmem, size = 0x9000, scoped, tag = 'internal scratch']
  %s0 = inlined_call_operand.vmem [shape: f32[64,16], index: 0, kind: input, shape index: {}]
  %s1 = inlined_call_operand.vmem [shape: f32[16,128], index: 1, kind: input, shape index: {}]
  %s2 = inlined_call_operand.hbm [shape: f32[128,128], index: 2, kind: input, shape index: {}]
  %s3 = inlined_call_operand.hbm [shape: f32[128,128], index: 3, kind: input, shape index: {}]
  %s4 = inlined_call_operand.vmem [shape: f32[3,128], index: 4, kind: input, shape index: {}]
  %s5 = inlined_call_operand.vmem [shape: f32[64,128], index: 5, kind: output, shape index: {}]
  %s6 = sld [smem:[#allocation0]]
  $region61: #{twinned_q_forward.1} parent=0
    _
  %s8 = ssub.s32 1, %s6
  %s9 = scalar_select 0, %s8, %s6
  $region1: #{twinned_q_forward.1} parent=0
    #allocation2 [shape = 'u8[65536]{0}', space=vmem, size = 0x10000, scoped, tag = 'input window, operand 2, single buffered']
    #allocation3 [shape = 's32[2]{0}', space=sflag, size = 0x8, scoped, tag = 'scoped memory for twinned_q_forward.1']
    #allocation4 [shape = 'u8[65536]{0}', space=vmem, size = 0x10000, scoped, tag = 'input window, operand 3, single buffered']
    #allocation5 [shape = 's32[1]{0}', space=sflag, size = 0x4, scoped, tag = 'scoped memory for twinned_q_forward.1']
    %10 = vsyncpa [#allocation3], 0
    %11 = vsyncpa [#allocation5], 0
    loop: start=0, step=1, limit=4
    $region2: #{twinned_q_forward.1} parent=1 // loop_pre_header
      _
    $region3: #{twinned_q_forward.1} parent=1 // loop_header
      %s13 = sphi 0, %s17
      %p14 = scmp.ge.s32.totalorder %s13, 4
      %s23 = sphi 0, %s25
      %s26 = sphi 0, %s23
      %s27 = sphi 0, %s26
      %s43 = sphi 0, %s27
      %s47 = sphi 0, %s47
      %s49 = sphi 0, %s47
      %s50 = sphi 0, %s49
      %s64 = sphi 0, %s50
      %s68 = sphi 0, %s68
      %s70 = sphi 0, %s68
      %s71 = sphi 0, %s70
      %s85 = sphi 0, %s71
      %s89 = sphi 0, %s89
      %s91 = sphi 0, %s89
      %s92 = sphi 0, %s91
      %s106 = sphi 0, %s92
      %s110 = sphi 0, %s110
      %s112 = sphi 0, %s110
      %s113 = sphi 0, %s112
      %s127 = sphi 0, %s113
      %s133 = sphi 0, %s135
      %s136 = sphi 0, %s133
      %s137 = sphi 0, %s136
      %s153 = sphi 0, %s137
    $region4: #{twinned_q_forward.1} parent=1 // loop_header_branch
      %16 = sbr.rel (%p14) target = $region8
    $region5: #{twinned_q_forward.1} parent=1 // loop_body
      %s18 = ssub.s32 %s13, 1
      %s19 = ssub.s32 %s13, 2
      %s20 = sadd.s32 %s13, 1
      %s21 = ssub.s32 %s13, %s20
      %p22 = scmp.eq.s32.totalorder %s21, 0
      %s24 = sadd.s32 %s23, 1
      %s25 = scalar_select %p22, %s23, %s24
      %p28 = pneg %p22
      %p29 = scmp.eq.s32.totalorder %s13, 1
      %p30 = por %p28, %p29
      %p31 = scmp.ne.s32.totalorder %s23, %s26
      %p32 = scmp.eq.s32.totalorder %s13, 0
      %p33 = por %p31, %p32
      %p34 = scmp.ne.s32.totalorder %s23, %s26
      %p35 = scmp.eq.s32.totalorder %s18, 1
      %p36 = por %p34, %p35
      %p37 = scmp.ne.s32.totalorder %s26, %s27
      %p38 = scmp.eq.s32.totalorder %s18, 0
      %p39 = por %p37, %p38
      %p40 = scmp.ne.s32.totalorder %s26, %s27
      %p41 = scmp.eq.s32.totalorder %s19, 1
      %p42 = por %p40, %p41
      %p44 = scmp.ne.s32.totalorder %s27, %s43
      %p45 = scmp.eq.s32.totalorder %s19, 0
      %p46 = por %p44, %p45
      %s48 = sadd.s32 %s47, 1
      %p51 = scmp.eq.s32.totalorder %s13, 1
      %p52 = scmp.ne.s32.totalorder %s47, %s49
      %p53 = scmp.eq.s32.totalorder %s13, 0
      %p54 = por %p52, %p53
      %p55 = scmp.ne.s32.totalorder %s47, %s49
      %p56 = scmp.eq.s32.totalorder %s18, 1
      %p57 = por %p55, %p56
      %p58 = scmp.ne.s32.totalorder %s49, %s50
      %p59 = scmp.eq.s32.totalorder %s18, 0
      %p60 = por %p58, %p59
      %p61 = scmp.ne.s32.totalorder %s49, %s50
      %p62 = scmp.eq.s32.totalorder %s19, 1
      %p63 = por %p61, %p62
      %p65 = scmp.ne.s32.totalorder %s50, %s64
      %p66 = scmp.eq.s32.totalorder %s19, 0
      %p67 = por %p65, %p66
      %s69 = sadd.s32 %s68, 1
      %p72 = scmp.eq.s32.totalorder %s13, 1
      %p73 = scmp.ne.s32.totalorder %s68, %s70
      %p74 = scmp.eq.s32.totalorder %s13, 0
      %p75 = por %p73, %p74
      %p76 = scmp.ne.s32.totalorder %s68, %s70
      %p77 = scmp.eq.s32.totalorder %s18, 1
      %p78 = por %p76, %p77
      %p79 = scmp.ne.s32.totalorder %s70, %s71
      %p80 = scmp.eq.s32.totalorder %s18, 0
      %p81 = por %p79, %p80
      %p82 = scmp.ne.s32.totalorder %s70, %s71
      %p83 = scmp.eq.s32.totalorder %s19, 1
      %p84 = por %p82, %p83
      %p86 = scmp.ne.s32.totalorder %s71, %s85
      %p87 = scmp.eq.s32.totalorder %s19, 0
      %p88 = por %p86, %p87
      %s90 = sadd.s32 %s89, 1
      %p93 = scmp.eq.s32.totalorder %s13, 1
      %p94 = scmp.ne.s32.totalorder %s89, %s91
      %p95 = scmp.eq.s32.totalorder %s13, 0
      %p96 = por %p94, %p95
      %p97 = scmp.ne.s32.totalorder %s89, %s91
      %p98 = scmp.eq.s32.totalorder %s18, 1
      %p99 = por %p97, %p98
      %p100 = scmp.ne.s32.totalorder %s91, %s92
      %p101 = scmp.eq.s32.totalorder %s18, 0
      %p102 = por %p100, %p101
      %p103 = scmp.ne.s32.totalorder %s91, %s92
      %p104 = scmp.eq.s32.totalorder %s19, 1
      %p105 = por %p103, %p104
      %p107 = scmp.ne.s32.totalorder %s92, %s106
      %p108 = scmp.eq.s32.totalorder %s19, 0
      %p109 = por %p107, %p108
      %s111 = sadd.s32 %s110, 1
      %p114 = scmp.eq.s32.totalorder %s13, 1
      %p115 = scmp.ne.s32.totalorder %s110, %s112
      %p116 = scmp.eq.s32.totalorder %s13, 0
      %p117 = por %p115, %p116
      %p118 = scmp.ne.s32.totalorder %s110, %s112
      %p119 = scmp.eq.s32.totalorder %s18, 1
      %p120 = por %p118, %p119
      %p121 = scmp.ne.s32.totalorder %s112, %s113
      %p122 = scmp.eq.s32.totalorder %s18, 0
      %p123 = por %p121, %p122
      %p124 = scmp.ne.s32.totalorder %s112, %s113
      %p125 = scmp.eq.s32.totalorder %s19, 1
      %p126 = por %p124, %p125
      %p128 = scmp.ne.s32.totalorder %s113, %s127
      %p129 = scmp.eq.s32.totalorder %s19, 0
      %p130 = por %p128, %p129
      %s131 = ssub.s32 %s13, %s20
      %p132 = scmp.eq.s32.totalorder %s131, 0
      %s134 = sadd.s32 %s133, 1
      %s135 = scalar_select %p132, %s133, %s134
      %p138 = pneg %p132
      %p139 = scmp.eq.s32.totalorder %s13, 1
      %p140 = por %p138, %p139
      %p141 = scmp.ne.s32.totalorder %s133, %s136
      %p142 = scmp.eq.s32.totalorder %s13, 0
      %p143 = por %p141, %p142
      %p144 = scmp.ne.s32.totalorder %s133, %s136
      %p145 = scmp.eq.s32.totalorder %s18, 1
      %p146 = por %p144, %p145
      %p147 = scmp.ne.s32.totalorder %s136, %s137
      %p148 = scmp.eq.s32.totalorder %s18, 0
      %p149 = por %p147, %p148
      %p150 = scmp.ne.s32.totalorder %s136, %s137
      %p151 = scmp.eq.s32.totalorder %s19, 1
      %p152 = por %p150, %p151
      %p154 = scmp.ne.s32.totalorder %s137, %s153
      %p155 = scmp.eq.s32.totalorder %s19, 0
      %p156 = por %p154, %p155
      %p157 = scmp.le.s32.totalorder 1, %s13
      %p158 = scmp.lt.s32.totalorder %s13, 3
      %p159 = pnand %p157, %p158
      %p160 = pneg %p159
      // Predicated region
      $region9: #{twinned_q_forward.1} parent=5 // pred_check
        _
      $region10: #{twinned_q_forward.1} parent=5 // pred_check_branch
        %162 = sbr.rel (%p159) target = $region12
      $region11: #{twinned_q_forward.1} parent=5 // pred_region
        %s163 = ssub.s32 %s13, 1
        // Predicated region
        $region13: #{twinned_q_forward.1} parent=11 // pred_check
          %p164 = pneg %p60
        $region14: #{twinned_q_forward.1} parent=11 // pred_check_branch
          %166 = sbr.rel (%p164) target = $region16
        $region15: #{twinned_q_forward.1} parent=11 // pred_region
          _
        $region16: #{twinned_q_forward.1} parent=11 // pred_fallthru
          _
        // Predicated region
        $region17: #{twinned_q_forward.1} parent=11 // pred_check
          %p167 = pneg %p81
        $region18: #{twinned_q_forward.1} parent=11 // pred_check_branch
          %169 = sbr.rel (%p167) target = $region20
        $region19: #{twinned_q_forward.1} parent=11 // pred_region
          %171 = vsyncadd [#allocation3], 0
          %s172 = sshll.u32 %s2, 4
          %s173 = int_to_ptr.hbm [resolvable:$true] %s172
          %s174 = sshll.u32 [#allocation2], 4
          %s175 = int_to_ptr.vmem [resolvable:$true] %s174
          %180 = dma.hbm_to_vmem [thread:$0]  %s173, 2048, %s175, [#allocation3], 128, 128, 8
        $region20: #{twinned_q_forward.1} parent=11 // pred_fallthru
          _
        // Predicated region
        $region21: #{twinned_q_forward.1} parent=11 // pred_check
          %p181 = pneg %p102
        $region22: #{twinned_q_forward.1} parent=11 // pred_check_branch
          %183 = sbr.rel (%p181) target = $region24
        $region23: #{twinned_q_forward.1} parent=11 // pred_region
          %185 = vsyncadd [#allocation5], 0
          %s186 = sshll.u32 %s3, 4
          %s187 = int_to_ptr.hbm [resolvable:$true] %s186
          %s188 = sshll.u32 [#allocation4], 4
          %s189 = int_to_ptr.vmem [resolvable:$true] %s188
          %194 = dma.hbm_to_vmem [thread:$0]  %s187, 2048, %s189, [#allocation5], 128, 128, 8
        $region24: #{twinned_q_forward.1} parent=11 // pred_fallthru
          _
        // Predicated region
        $region25: #{twinned_q_forward.1} parent=11 // pred_check
          %p195 = pneg %p123
        $region26: #{twinned_q_forward.1} parent=11 // pred_check_branch
          %197 = sbr.rel (%p195) target = $region28
        $region27: #{twinned_q_forward.1} parent=11 // pred_region
          _
        $region28: #{twinned_q_forward.1} parent=11 // pred_fallthru
          _
      $region12: #{twinned_q_forward.1} parent=5 // pred_fallthru
        _
      %p198 = scmp.lt.s32.totalorder %s13, 2
      // Predicated region
      $region29: #{twinned_q_forward.1} parent=5 // pred_check
        %p199 = pneg %p198
      $region30: #{twinned_q_forward.1} parent=5 // pred_check_branch
        %201 = sbr.rel (%p199) target = $region32
      $region31: #{twinned_q_forward.1} parent=5 // pred_region
        // Predicated region
        $region33: #{twinned_q_forward.1} parent=31 // pred_check
          %p202 = pneg %p33
        $region34: #{twinned_q_forward.1} parent=31 // pred_check_branch
          %204 = sbr.rel (%p202) target = $region36
        $region35: #{twinned_q_forward.1} parent=31 // pred_region
          %s205 = smul.u32 4, %s13
          %p206 = scmp.lt.s32.totalorder %s205, 7
          %s207 = scalar_select %p206, %s205, 7
          %s208 = smul.addr %s207, 8
          %s209 = scalar_lea.vmem %s0, %s208
          %s210 = smul.u32 4, %s13
        $region36: #{twinned_q_forward.1} parent=31 // pred_fallthru
          _
      $region32: #{twinned_q_forward.1} parent=5 // pred_fallthru
        _
      %p211 = scmp.le.s32.totalorder 1, %s13
      %p212 = scmp.lt.s32.totalorder %s13, 3
      %p213 = pnand %p211, %p212
      %p214 = pneg %p213
      // Predicated region
      $region37: #{twinned_q_forward.1} parent=5 // pred_check
        _
      $region38: #{twinned_q_forward.1} parent=5 // pred_check_branch
        %216 = sbr.rel (%p213) target = $region40
      $region39: #{twinned_q_forward.1} parent=5 // pred_region
        %s217 = ssub.s32 %s13, 1
        // Predicated region
        $region41: #{twinned_q_forward.1} parent=39 // pred_check
          %p218 = pneg %p81
        $region42: #{twinned_q_forward.1} parent=39 // pred_check_branch
          %220 = sbr.rel (%p218) target = $region44
        $region43: #{twinned_q_forward.1} parent=39 // pred_region
          %222 = dma.done [#allocation3], 2048
        $region44: #{twinned_q_forward.1} parent=39 // pred_fallthru
          _
        // Predicated region
        $region45: #{twinned_q_forward.1} parent=39 // pred_check
          %p223 = pneg %p102
        $region46: #{twinned_q_forward.1} parent=39 // pred_check_branch
          %225 = sbr.rel (%p223) target = $region48
        $region47: #{twinned_q_forward.1} parent=39 // pred_region
          %227 = dma.done [#allocation5], 2048
        $region48: #{twinned_q_forward.1} parent=39 // pred_fallthru
          _
        %s228 = smul.u32 4, %s18
        %p229 = scmp.lt.s32.totalorder %s228, 7
        %s230 = scalar_select %p229, %s228, 7
        %s231 = smul.addr %s230, 8
        %s232 = scalar_lea.vmem %s0, %s231
        %p233 = pneg %p39
        %p234 = pneg %p36
        %p235 = pneg %p60
        %p236 = pneg %p57
        %p237 = pneg %p81
        %p238 = pneg %p78
        %p239 = pneg %p102
        %p240 = pneg %p99
        %p241 = pneg %p123
        %p242 = pneg %p120
        %p243 = pneg %p149
        %p244 = pneg %p146
        %s245 = smul.u32 4, %s18
        %p246 = scmp.lt.s32.totalorder %s245, 7
        %s247 = scalar_select %p246, %s245, 7
        %s248 = smul.addr %s247, 8
        %s249 = scalar_lea.vmem %s5, %s248
        %s250 = smul.u32 4, %s18
        %p251 = scmp.lt.s32.totalorder %s250, 7
        %s252 = scalar_select %p251, %s250, 7
        %s253 = smul.addr %s252, 8
        %s254 = scalar_lea.vmem %s0, %s253
        %s255 = smul.u32 4, %s18
        %s256 = smul.u32 4, %s18
        %p257 = scmp.lt.s32.totalorder %s256, 7
        %s258 = scalar_select %p257, %s256, 7
        %s259 = smul.addr %s258, 8
        %s260 = scalar_lea.vmem %s5, %s259
        %s261 = smul.u32 4, %s18
        %v262 = vld [vmem:[%s254] sm:$0xff]
        %v263 = vld [vmem:[%s254 + $0x8] sm:$0xff]
        %v264 = vld [vmem:[%s254 + $0x10] sm:$0xff]
        %v265 = vld [vmem:[%s254 + $0x18] sm:$0xff]
        %v266 = vld [vmem:[%s1] sm:$0xff]
        %v267 = vld [vmem:[%s1 + $0x8] sm:$0xff]
        %v268 = vld [vmem:[%s4] sm:$0x1]
        %v269 = vperm.slane %v268, 0
        %vm270 = vcmask 130048
        %v272 = vsel %vm270, %v262, 0
        %v275 = vsel %vm270, %v263, 0
        %v278 = vsel %vm270, %v264, 0
        %v281 = vsel %vm270, %v265, 0
        %283 = vmatpush.msra.mxu0 0.0
        %284 = vmatpush.msra.mxu0 0.0
        %285 = vmatpush.msra.mxu0 0.0
        %286 = vmatpush.msra.mxu0 0.0
        %287 = vmatpush.msra.mxu0 0.0
        %288 = vmatpush.msra.mxu0 0.0
        %289 = vmatpush.msra.mxu0 0.0
        %290 = vmatpush.msra.mxu0 0.0
        %291 = vmatpush.msra.mxu0 0.0
        %292 = vmatpush.msra.mxu0 0.0
        %293 = vmatpush.msra.mxu0 0.0
        %294 = vmatpush.msra.mxu0 0.0
        %295 = vmatpush.msra.mxu0 0.0
        %296 = vmatpush.msra.mxu0 0.0
        %297 = vmatpush.msra.mxu0 %v267
        %298 = vmatpush.msra.mxu0 %v266
        %299 = vmatmul.f32.gmra.mxu0 %v272
        %v300 = vpop.f32.mrf.mxu0
        %v301 = vadd.f32 %v269, %v300
        %302 = vmatmul.f32.gmra.mxu0 %v275
        %v303 = vpop.f32.mrf.mxu0
        %v304 = vadd.f32 %v269, %v303
        %305 = vmatmul.f32.gmra.mxu0 %v278
        %v306 = vpop.f32.mrf.mxu0
        %v307 = vadd.f32 %v269, %v306
        %308 = vmatmul.f32.gmra.mxu0 %v281
        %v309 = vpop.f32.mrf.mxu0
        %v310 = vadd.f32 %v269, %v309
        %311 = vdwg.mxu0
        %v312 = vmax.f32 %v301, 0.0
        %v313 = vmax.f32 %v304, 0.0
        %v314 = vmax.f32 %v307, 0.0
        %v315 = vmax.f32 %v310, 0.0
        %v316 = vld [vmem:[#allocation2] sm:$0xff]
        %v317 = vld [vmem:[#allocation2 + $0x8] sm:$0xff]
        %v318 = vld [vmem:[#allocation2 + $0x10] sm:$0xff]
        %v319 = vld [vmem:[#allocation2 + $0x18] sm:$0xff]
        %v320 = vld [vmem:[#allocation2 + $0x20] sm:$0xff]
        %v321 = vld [vmem:[#allocation2 + $0x28] sm:$0xff]
        %v322 = vld [vmem:[#allocation2 + $0x30] sm:$0xff]
        %v323 = vld [vmem:[#allocation2 + $0x38] sm:$0xff]
        %v324 = vld [vmem:[#allocation2 + $0x40] sm:$0xff]
        %v325 = vld [vmem:[#allocation2 + $0x48] sm:$0xff]
        %v326 = vld [vmem:[#allocation2 + $0x50] sm:$0xff]
        %v327 = vld [vmem:[#allocation2 + $0x58] sm:$0xff]
        %v328 = vld [vmem:[#allocation2 + $0x60] sm:$0xff]
        %v329 = vld [vmem:[#allocation2 + $0x68] sm:$0xff]
        %v330 = vld [vmem:[#allocation2 + $0x70] sm:$0xff]
        %v331 = vld [vmem:[#allocation2 + $0x78] sm:$0xff]
        %v332 = vld [vmem:[%s4 + $0x1] sm:$0x1]
        %v333 = vperm.slane %v332, 0
        %334 = vmatpush.msra.mxu0 %v331
        %335 = vmatpush.msra.mxu0 %v330
        %336 = vmatpush.msra.mxu0 %v329
        %337 = vmatpush.msra.mxu0 %v328
        %338 = vmatpush.msra.mxu0 %v327
        %339 = vmatpush.msra.mxu0 %v326
        %340 = vmatpush.msra.mxu0 %v325
        %341 = vmatpush.msra.mxu0 %v324
        %342 = vmatpush.msra.mxu0 %v323
        %343 = vmatpush.msra.mxu0 %v322
        %344 = vmatpush.msra.mxu0 %v321
        %345 = vmatpush.msra.mxu0 %v320
        %346 = vmatpush.msra.mxu0 %v319
        %347 = vmatpush.msra.mxu0 %v318
        %348 = vmatpush.msra.mxu0 %v317
        %349 = vmatpush.msra.mxu0 %v316
        %350 = vmatmul.f32.gmra.mxu0 %v312
        %v351 = vpop.f32.mrf.mxu0
        %v352 = vadd.f32 %v333, %v351
        %353 = vmatmul.f32.gmra.mxu0 %v313
        %v354 = vpop.f32.mrf.mxu0
        %v355 = vadd.f32 %v333, %v354
        %356 = vmatmul.f32.gmra.mxu0 %v314
        %v357 = vpop.f32.mrf.mxu0
        %v358 = vadd.f32 %v333, %v357
        %359 = vmatmul.f32.gmra.mxu0 %v315
        %v360 = vpop.f32.mrf.mxu0
        %v361 = vadd.f32 %v333, %v360
        %362 = vdwg.mxu0
        %v363 = vmax.f32 %v352, 0.0
        %v364 = vmax.f32 %v355, 0.0
        %v365 = vmax.f32 %v358, 0.0
        %v366 = vmax.f32 %v361, 0.0
        %v367 = vld [vmem:[#allocation4] sm:$0xff]
        %v368 = vld [vmem:[#allocation4 + $0x8] sm:$0xff]
        %v369 = vld [vmem:[#allocation4 + $0x10] sm:$0xff]
        %v370 = vld [vmem:[#allocation4 + $0x18] sm:$0xff]
        %v371 = vld [vmem:[#allocation4 + $0x20] sm:$0xff]
        %v372 = vld [vmem:[#allocation4 + $0x28] sm:$0xff]
        %v373 = vld [vmem:[#allocation4 + $0x30] sm:$0xff]
        %v374 = vld [vmem:[#allocation4 + $0x38] sm:$0xff]
        %v375 = vld [vmem:[#allocation4 + $0x40] sm:$0xff]
        %v376 = vld [vmem:[#allocation4 + $0x48] sm:$0xff]
        %v377 = vld [vmem:[#allocation4 + $0x50] sm:$0xff]
        %v378 = vld [vmem:[#allocation4 + $0x58] sm:$0xff]
        %v379 = vld [vmem:[#allocation4 + $0x60] sm:$0xff]
        %v380 = vld [vmem:[#allocation4 + $0x68] sm:$0xff]
        %v381 = vld [vmem:[#allocation4 + $0x70] sm:$0xff]
        %v382 = vld [vmem:[#allocation4 + $0x78] sm:$0xff]
        %v383 = vld [vmem:[%s4 + $0x2] sm:$0x1]
        %v384 = vperm.slane %v383, 0
        %385 = vmatpush.msra.mxu0 %v382
        %386 = vmatpush.msra.mxu0 %v381
        %387 = vmatpush.msra.mxu0 %v380
        %388 = vmatpush.msra.mxu0 %v379
        %389 = vmatpush.msra.mxu0 %v378
        %390 = vmatpush.msra.mxu0 %v377
        %391 = vmatpush.msra.mxu0 %v376
        %392 = vmatpush.msra.mxu0 %v375
        %393 = vmatpush.msra.mxu0 %v374
        %394 = vmatpush.msra.mxu0 %v373
        %395 = vmatpush.msra.mxu0 %v372
        %396 = vmatpush.msra.mxu0 %v371
        %397 = vmatpush.msra.mxu0 %v370
        %398 = vmatpush.msra.mxu0 %v369
        %399 = vmatpush.msra.mxu0 %v368
        %400 = vmatpush.msra.mxu0 %v367
        %401 = vmatmul.f32.gmra.mxu0 %v363
        %v402 = vpop.f32.mrf.mxu0
        %v403 = vadd.f32 %v384, %v402
        %404 = vmatmul.f32.gmra.mxu0 %v364
        %v405 = vpop.f32.mrf.mxu0
        %v406 = vadd.f32 %v384, %v405
        %407 = vmatmul.f32.gmra.mxu0 %v365
        %v408 = vpop.f32.mrf.mxu0
        %v409 = vadd.f32 %v384, %v408
        %410 = vmatmul.f32.gmra.mxu0 %v366
        %v411 = vpop.f32.mrf.mxu0
        %v412 = vadd.f32 %v384, %v411
        %413 = vdwg.mxu0
        %414 = vst [vmem:[%s260] sm:$0xff] %v403
        %415 = vst [vmem:[%s260 + $0x8] sm:$0xff] %v406
        %416 = vst [vmem:[%s260 + $0x10] sm:$0xff] %v409
        %417 = vst [vmem:[%s260 + $0x18] sm:$0xff] %v412
        %s418 = smul.u32 4, %s18
        %p419 = scmp.lt.s32.totalorder %s418, 7
        %s420 = scalar_select %p419, %s418, 7
        %s421 = smul.addr %s420, 8
        %s422 = scalar_lea.vmem %s5, %s421
        // Predicated region
        $region49: #{twinned_q_forward.1} parent=39 // pred_check
          %p423 = pneg %p146
        $region50: #{twinned_q_forward.1} parent=39 // pred_check_branch
          %425 = sbr.rel (%p423) target = $region52
        $region51: #{twinned_q_forward.1} parent=39 // pred_region
          %s426 = smul.u32 4, %s18
        $region52: #{twinned_q_forward.1} parent=39 // pred_fallthru
          _
      $region40: #{twinned_q_forward.1} parent=5 // pred_fallthru
        _
      %p427 = scmp.le.s32.totalorder 2, %s13
      // Predicated region
      $region53: #{twinned_q_forward.1} parent=5 // pred_check
        %p428 = pneg %p427
      $region54: #{twinned_q_forward.1} parent=5 // pred_check_branch
        %430 = sbr.rel (%p428) target = $region56
      $region55: #{twinned_q_forward.1} parent=5 // pred_region
        %s431 = ssub.s32 %s13, 2
        // Predicated region
        $region57: #{twinned_q_forward.1} parent=55 // pred_check
          %p432 = pneg %p152
        $region58: #{twinned_q_forward.1} parent=55 // pred_check_branch
          %434 = sbr.rel (%p432) target = $region60
        $region59: #{twinned_q_forward.1} parent=55 // pred_region
          %s435 = smul.u32 4, %s19
          %p436 = scmp.lt.s32.totalorder %s435, 7
          %s437 = scalar_select %p436, %s435, 7
          %s438 = smul.addr %s437, 8
          %s439 = scalar_lea.vmem %s5, %s438
        $region60: #{twinned_q_forward.1} parent=55 // pred_fallthru
          _
      $region56: #{twinned_q_forward.1} parent=5 // pred_fallthru
        _
    $region6: #{twinned_q_forward.1} parent=1 // loop_footer
      %s17 = sadd.s32 1, %s13
    $region7: #{twinned_q_forward.1} parent=1 // loop_footer_branch
      %12 = sbr.rel target = $region3
    $region8: #{twinned_q_forward.1} parent=1 // loop_exit
      _
    %440 = vsyncpa [#allocation3], 1
    %s441 = scalar_lea.sflag [#allocation3], 1
    %442 = vsyncpa %s441, 1
    %443 = vsyncpa [#allocation5], 1

</llo_original>
